<compile_context>
chip_gen: v6e
topology: v6e:2x2x1
jax: 0.10.0
libtpu: 0.0.40
codegen_flags: <defaults>
</compile_context>

<pallas_src>
import jax
import jax.numpy as jnp
from jax.experimental import pallas as pl
from jax.experimental.pallas import tpu as pltpu

_LANE_OFF = 128  # aligned lane offset of the tile inside the halo scratch


def _sublane(dtype) -> int:
    """Sublane packing tile for this dtype (8 for f32, 16 for bf16, 32 for int8)."""
    return max(8, 32 // jnp.dtype(dtype).itemsize)


def _make_kernel(sub):
    L = _LANE_OFF

    def kernel(x_ref, top_ref, bot_ref, o_ref, xp_ref):
        # x_ref:   (1, C, tH, W)         current H-tile of the depth image
        # top_ref: (1, 1, C, W)          image row just above this tile (0 at border)
        # bot_ref: (1, 1, C, W)          image row just below this tile (0 at border)
        # o_ref:   (1, C, tH, W)         normals output tile
        # xp_ref:  (C, tH+2*sub, W+256)  VMEM halo scratch (only read strips written)
        _, C, tH, W = x_ref.shape
        f32 = jnp.float32

        zcol = jnp.zeros((tH, 1), xp_ref.dtype)
        for c in range(C):
            # Interior tile at an (sub, 128)-aligned offset: fully aligned store.
            xp_ref[c, sub:sub + tH, L:L + W] = x_ref[0, c]
            # W halo: the two columns read by the +/-1 lane shifts, kept zero.
            xp_ref[c, sub:sub + tH, L - 1:L] = zcol
            xp_ref[c, sub:sub + tH, L + W:L + W + 1] = zcol
            # H halo: neighbouring image rows (already zero at the image borders).
            xp_ref[c, sub - 1:sub, L:L + W] = top_ref[0, 0, c:c + 1, :]
            xp_ref[c, sub + tH:sub + tH + 1, L:L + W] = bot_ref[0, 0, c:c + 1, :]

        # Central differences: each shifted operand is its own lazy Ref read
        # (static offsets); nothing oversized is kept live, no masks needed.
        dx = []
        dy = []
        for c in range(C):
            xr = xp_ref[c, sub:sub + tH, L + 1:L + 1 + W].astype(f32)      # x[., h, w+1]
            xl = xp_ref[c, sub:sub + tH, L - 1:L - 1 + W].astype(f32)      # x[., h, w-1]
            dx.append(xr - xl)
            xd = xp_ref[c, sub + 1:sub + 1 + tH, L:L + W].astype(f32)      # x[., h+1, w]
            xu = xp_ref[c, sub - 1:sub - 1 + tH, L:L + W].astype(f32)      # x[., h-1, w]
            dy.append(xd - xu)

        # normal = -cross(dx, dy) along the channel axis.
        o_ref[0, 0] = (dx[2] * dy[1] - dx[1] * dy[2]).astype(o_ref.dtype)
        o_ref[0, 1] = (dx[0] * dy[2] - dx[2] * dy[0]).astype(o_ref.dtype)
        o_ref[0, 2] = (dx[1] * dy[0] - dx[0] * dy[1]).astype(o_ref.dtype)

    return kernel


def _pick_tile_h(Hp, W, C, itemsize, sub, *, want_splits, max_block_bytes):
    """Largest multiple-of-`sub` divisor of Hp under the per-block byte cap."""
    cap_rows = max_block_bytes // max(C * W * itemsize, 1)
    cap_rows = max(sub, (cap_rows // sub) * sub)
    limit = Hp
    if want_splits and Hp >= 2 * sub:          # give both v7x TCs work at B == 1
        limit = max(sub, ((Hp // 2) // sub) * sub)
    t = min(cap_rows, limit, Hp)
    t = max(sub, (t // sub) * sub)
    while Hp % t:
        t -= sub
    return t


def depth2normal(x, *, tile_h=None, max_block_bytes=2 * 1024 * 1024):
    """x: (B, 3, H, W) float -> normals (B, 3, H, W), same dtype."""
    B, C, H, W = x.shape
    if C != 3:
        raise ValueError("Depth2Normal requires C == 3 (cross product over dim=1).")
    if not jnp.issubdtype(x.dtype, jnp.floating):
        raise ValueError("Depth2Normal expects a floating-point input.")
    dtype = x.dtype
    itemsize = jnp.dtype(dtype).itemsize
    sub = _sublane(dtype)

    # Pad H to a multiple of the sublane tile; the zero rows below the image
    # reproduce conv2d's zero padding, and the extra output rows are sliced off.
    Hp = -(-H // sub) * sub
    xw = x if Hp == H else jnp.pad(x, ((0, 0), (0, 0), (0, Hp - H), (0, 0)))

    if tile_h is None:
        tile_h = _pick_tile_h(Hp, W, C, itemsize, sub,
                              want_splits=(B == 1),
                              max_block_bytes=max_block_bytes)
    if tile_h <= 0 or Hp % tile_h != 0 or tile_h % sub != 0:
        raise ValueError(f"tile_h must divide padded H ({Hp}) and be a multiple of {sub}.")
    tH = tile_h
    nH = Hp // tH

    # Halo rows: image row just above / below each H-tile (zeros at borders).
    # Shape (B, nH, C, W) so every H-tile block stays non-overlapping; only
    # 2*nH rows per image of extra HBM traffic.
    if nH == 1:
        top = jnp.zeros((B, 1, C, W), dtype)
        bot = jnp.zeros((B, 1, C, W), dtype)
    else:
        zrow = jnp.zeros((B, C, 1, W), dtype)
        top = jnp.concatenate([zrow, xw[:, :, tH - 1:Hp - 1:tH, :]], axis=2)
        bot = jnp.concatenate([xw[:, :, tH::tH, :], zrow], axis=2)
        top = jnp.transpose(top, (0, 2, 1, 3))  # (B, nH, C, W)
        bot = jnp.transpose(bot, (0, 2, 1, 3))  # (B, nH, C, W)

    cost = pl.CostEstimate(
        flops=9 * B * C * Hp * W,
        transcendentals=0,
        bytes_accessed=2 * B * C * Hp * W * itemsize,
    )

    # TODO(synk): if W is far from a multiple of 128, fold part of H into the
    # lane dim in the wrapper to keep output stores fully lane-dense.
    out = pl.pallas_call(
        _make_kernel(sub),
        out_shape=jax.ShapeDtypeStruct((B, C, Hp, W), dtype),
        grid=(B, nH),
        in_specs=[
            pl.BlockSpec((1, C, tH, W), lambda b, h: (b, 0, h, 0)),
            pl.BlockSpec((1, 1, C, W), lambda b, h: (b, h, 0, 0)),
            pl.BlockSpec((1, 1, C, W), lambda b, h: (b, h, 0, 0)),
        ],
        out_specs=pl.BlockSpec((1, C, tH, W), lambda b, h: (b, 0, h, 0)),
        scratch_shapes=[pltpu.VMEM((C, tH + 2 * sub, W + 2 * _LANE_OFF), dtype)],
        compiler_params=pltpu.CompilerParams(
            dimension_semantics=("parallel", "parallel"),
            vmem_limit_bytes=48 * 1024 * 1024),
        cost_estimate=cost,
    )(xw, top, bot)

    return out if Hp == H else out[:, :, :H, :]


def _reference(x):
    """Pure-JAX reference mirroring the PyTorch module."""
    xp = jnp.pad(x, ((0, 0), (0, 0), (1, 1), (1, 1)))
    dx = xp[:, :, 1:-1, 2:] - xp[:, :, 1:-1, :-2]
    dy = xp[:, :, 2:, 1:-1] - xp[:, :, :-2, 1:-1]
    return -jnp.cross(dx, dy, axis=1)


if __name__ == "__main__":
    key = jax.random.PRNGKey(0)
    k1, k2, k3 = jax.random.split(key, 3)

    # Case 1: single H-tile per image (nH == 1, zero-halo path).
    x1 = jax.random.normal(k1, (2, 3, 16, 16), dtype=jnp.float32)
    o1 = jax.block_until_ready(depth2normal(x1))
    assert o1.shape == x1.shape
    assert jnp.allclose(o1, _reference(x1), atol=1e-5, rtol=1e-5), "mismatch (single tile)"

    # Case 2: several H-tiles with cross-tile halo rows, lane-dense W=128.
    x2 = jax.random.normal(k2, (1, 3, 32, 128), dtype=jnp.float32)
    o2 = jax.block_until_ready(depth2normal(x2, tile_h=8))
    assert jnp.allclose(o2, _reference(x2), atol=1e-5, rtol=1e-5), "mismatch (tiled halos)"

    # Case 3: H not a multiple of the sublane tile (exercises the pad path).
    x3 = jax.random.normal(k3, (1, 3, 20, 16), dtype=jnp.float32)
    o3 = jax.block_until_ready(depth2normal(x3))
    assert jnp.allclose(o3, _reference(x3), atol=1e-5, rtol=1e-5), "mismatch (padded H)"

    print("KERNEL_OK")
</pallas_src>

<mosaic_0001>
module attributes {stable_mosaic.version = 11 : i64} {
  func.func @kernel(%arg0: i32, %arg1: i32, %arg2: memref<1x3x16x16xf32, #tpu.memory_space<vmem>>, %arg3: memref<1x1x3x16xf32, #tpu.memory_space<vmem>>, %arg4: memref<1x1x3x16xf32, #tpu.memory_space<vmem>>, %arg5: memref<1x3x16x16xf32, #tpu.memory_space<vmem>>, %arg6: memref<3x32x272xf32, #tpu.memory_space<vmem>>) attributes {dimension_semantics = [#tpu.dimension_semantics<parallel>, #tpu.dimension_semantics<parallel>], iteration_bounds = array<i64: 2, 1>, scalar_prefetch = 0 : i64, scratch_operands = 1 : i64, tpu.core_type = #tpu.core_type<tc>, window_params = [{transform_indices = @transform_0, window_bounds = array<i64: 1, 3, 16, 16>}, {transform_indices = @transform_1, window_bounds = array<i64: 1, 1, 3, 16>}, {transform_indices = @transform_2, window_bounds = array<i64: 1, 1, 3, 16>}, {transform_indices = @transform_3, window_bounds = array<i64: 1, 3, 16, 16>}]} {
    %cst = arith.constant 0.000000e+00 : f32
    %0 = vector.broadcast %cst : f32 to vector<16x1xf32>
    %c0 = arith.constant 0 : index
    %c0_0 = arith.constant 0 : index
    %c0_1 = arith.constant 0 : index
    %c0_2 = arith.constant 0 : index
    %1 = vector.load %arg2[%c0, %c0_0, %c0_1, %c0_2] : memref<1x3x16x16xf32, #tpu.memory_space<vmem>>, vector<1x1x16x16xf32>
    %2 = vector.shape_cast %1 : vector<1x1x16x16xf32> to vector<16x16xf32>
    %c0_3 = arith.constant 0 : index
    %c8 = arith.constant 8 : index
    %c128 = arith.constant 128 : index
    %3 = vector.load %arg6[%c0_3, %c8, %c128] : memref<3x32x272xf32, #tpu.memory_space<vmem>>, vector<1x16x16xf32>
    %4 = vector.shape_cast %3 : vector<1x16x16xf32> to vector<16x16xf32>
    %5 = vector.shape_cast %2 : vector<16x16xf32> to vector<1x16x16xf32>
    tpu.vector_store %arg6[%c0_3, %c8, %c128], %5 {strides = array<i32>} : memref<3x32x272xf32, #tpu.memory_space<vmem>>, vector<1x16x16xf32>,
    %c0_4 = arith.constant 0 : index
    %c8_5 = arith.constant 8 : index
    %c127 = arith.constant 127 : index
    %6 = vector.load %arg6[%c0_4, %c8_5, %c127] : memref<3x32x272xf32, #tpu.memory_space<vmem>>, vector<1x16x1xf32>
    %7 = vector.shape_cast %6 : vector<1x16x1xf32> to vector<16x1xf32>
    %8 = vector.shape_cast %0 : vector<16x1xf32> to vector<1x16x1xf32>
    tpu.vector_store %arg6[%c0_4, %c8_5, %c127], %8 {strides = array<i32>} : memref<3x32x272xf32, #tpu.memory_space<vmem>>, vector<1x16x1xf32>,
    %c0_6 = arith.constant 0 : index
    %c8_7 = arith.constant 8 : index
    %c144 = arith.constant 144 : index
    %9 = vector.load %arg6[%c0_6, %c8_7, %c144] : memref<3x32x272xf32, #tpu.memory_space<vmem>>, vector<1x16x1xf32>
    %10 = vector.shape_cast %9 : vector<1x16x1xf32> to vector<16x1xf32>
    %11 = vector.shape_cast %0 : vector<16x1xf32> to vector<1x16x1xf32>
    tpu.vector_store %arg6[%c0_6, %c8_7, %c144], %11 {strides = array<i32>} : memref<3x32x272xf32, #tpu.memory_space<vmem>>, vector<1x16x1xf32>,
    %c0_8 = arith.constant 0 : index
    %c0_9 = arith.constant 0 : index
    %c0_10 = arith.constant 0 : index
    %c0_11 = arith.constant 0 : index
    %12 = vector.load %arg3[%c0_8, %c0_9, %c0_10, %c0_11] : memref<1x1x3x16xf32, #tpu.memory_space<vmem>>, vector<1x1x1x16xf32>
    %13 = vector.shape_cast %12 : vector<1x1x1x16xf32> to vector<1x16xf32>
    %c0_12 = arith.constant 0 : index
    %c7 = arith.constant 7 : index
    %c128_13 = arith.constant 128 : index
    %14 = vector.load %arg6[%c0_12, %c7, %c128_13] : memref<3x32x272xf32, #tpu.memory_space<vmem>>, vector<1x1x16xf32>
    %15 = vector.shape_cast %14 : vector<1x1x16xf32> to vector<1x16xf32>
    %16 = vector.shape_cast %13 : vector<1x16xf32> to vector<1x1x16xf32>
    tpu.vector_store %arg6[%c0_12, %c7, %c128_13], %16 {strides = array<i32>} : memref<3x32x272xf32, #tpu.memory_space<vmem>>, vector<1x1x16xf32>,
    %c0_14 = arith.constant 0 : index
    %c0_15 = arith.constant 0 : index
    %c0_16 = arith.constant 0 : index
    %c0_17 = arith.constant 0 : index
    %17 = vector.load %arg4[%c0_14, %c0_15, %c0_16, %c0_17] : memref<1x1x3x16xf32, #tpu.memory_space<vmem>>, vector<1x1x1x16xf32>
    %18 = vector.shape_cast %17 : vector<1x1x1x16xf32> to vector<1x16xf32>
    %c0_18 = arith.constant 0 : index
    %c24 = arith.constant 24 : index
    %c128_19 = arith.constant 128 : index
    %19 = vector.load %arg6[%c0_18, %c24, %c128_19] : memref<3x32x272xf32, #tpu.memory_space<vmem>>, vector<1x1x16xf32>
    %20 = vector.shape_cast %19 : vector<1x1x16xf32> to vector<1x16xf32>
    %21 = vector.shape_cast %18 : vector<1x16xf32> to vector<1x1x16xf32>
    tpu.vector_store %arg6[%c0_18, %c24, %c128_19], %21 {strides = array<i32>} : memref<3x32x272xf32, #tpu.memory_space<vmem>>, vector<1x1x16xf32>,
    %c0_20 = arith.constant 0 : index
    %c1 = arith.constant 1 : index
    %c0_21 = arith.constant 0 : index
    %c0_22 = arith.constant 0 : index
    %22 = vector.load %arg2[%c0_20, %c1, %c0_21, %c0_22] : memref<1x3x16x16xf32, #tpu.memory_space<vmem>>, vector<1x1x16x16xf32>
    %23 = vector.shape_cast %22 : vector<1x1x16x16xf32> to vector<16x16xf32>
    %c1_23 = arith.constant 1 : index
    %c8_24 = arith.constant 8 : index
    %c128_25 = arith.constant 128 : index
    %24 = vector.load %arg6[%c1_23, %c8_24, %c128_25] : memref<3x32x272xf32, #tpu.memory_space<vmem>>, vector<1x16x16xf32>
    %25 = vector.shape_cast %24 : vector<1x16x16xf32> to vector<16x16xf32>
    %26 = vector.shape_cast %23 : vector<16x16xf32> to vector<1x16x16xf32>
    tpu.vector_store %arg6[%c1_23, %c8_24, %c128_25], %26 {strides = array<i32>} : memref<3x32x272xf32, #tpu.memory_space<vmem>>, vector<1x16x16xf32>,
    %c1_26 = arith.constant 1 : index
    %c8_27 = arith.constant 8 : index
    %c127_28 = arith.constant 127 : index
    %27 = vector.load %arg6[%c1_26, %c8_27, %c127_28] : memref<3x32x272xf32, #tpu.memory_space<vmem>>, vector<1x16x1xf32>
    %28 = vector.shape_cast %27 : vector<1x16x1xf32> to vector<16x1xf32>
    %29 = vector.shape_cast %0 : vector<16x1xf32> to vector<1x16x1xf32>
    tpu.vector_store %arg6[%c1_26, %c8_27, %c127_28], %29 {strides = array<i32>} : memref<3x32x272xf32, #tpu.memory_space<vmem>>, vector<1x16x1xf32>,
    %c1_29 = arith.constant 1 : index
    %c8_30 = arith.constant 8 : index
    %c144_31 = arith.constant 144 : index
    %30 = vector.load %arg6[%c1_29, %c8_30, %c144_31] : memref<3x32x272xf32, #tpu.memory_space<vmem>>, vector<1x16x1xf32>
    %31 = vector.shape_cast %30 : vector<1x16x1xf32> to vector<16x1xf32>
    %32 = vector.shape_cast %0 : vector<16x1xf32> to vector<1x16x1xf32>
    tpu.vector_store %arg6[%c1_29, %c8_30, %c144_31], %32 {strides = array<i32>} : memref<3x32x272xf32, #tpu.memory_space<vmem>>, vector<1x16x1xf32>,
    %c0_32 = arith.constant 0 : index
    %c0_33 = arith.constant 0 : index
    %c1_34 = arith.constant 1 : index
    %c0_35 = arith.constant 0 : index
    %33 = vector.load %arg3[%c0_32, %c0_33, %c1_34, %c0_35] : memref<1x1x3x16xf32, #tpu.memory_space<vmem>>, vector<1x1x1x16xf32>
    %34 = vector.shape_cast %33 : vector<1x1x1x16xf32> to vector<1x16xf32>
    %c1_36 = arith.constant 1 : index
    %c7_37 = arith.constant 7 : index
    %c128_38 = arith.constant 128 : index
    %35 = vector.load %arg6[%c1_36, %c7_37, %c128_38] : memref<3x32x272xf32, #tpu.memory_space<vmem>>, vector<1x1x16xf32>
    %36 = vector.shape_cast %35 : vector<1x1x16xf32> to vector<1x16xf32>
    %37 = vector.shape_cast %34 : vector<1x16xf32> to vector<1x1x16xf32>
    tpu.vector_store %arg6[%c1_36, %c7_37, %c128_38], %37 {strides = array<i32>} : memref<3x32x272xf32, #tpu.memory_space<vmem>>, vector<1x1x16xf32>,
    %c0_39 = arith.constant 0 : index
    %c0_40 = arith.constant 0 : index
    %c1_41 = arith.constant 1 : index
    %c0_42 = arith.constant 0 : index
    %38 = vector.load %arg4[%c0_39, %c0_40, %c1_41, %c0_42] : memref<1x1x3x16xf32, #tpu.memory_space<vmem>>, vector<1x1x1x16xf32>
    %39 = vector.shape_cast %38 : vector<1x1x1x16xf32> to vector<1x16xf32>
    %c1_43 = arith.constant 1 : index
    %c24_44 = arith.constant 24 : index
    %c128_45 = arith.constant 128 : index
    %40 = vector.load %arg6[%c1_43, %c24_44, %c128_45] : memref<3x32x272xf32, #tpu.memory_space<vmem>>, vector<1x1x16xf32>
    %41 = vector.shape_cast %40 : vector<1x1x16xf32> to vector<1x16xf32>
    %42 = vector.shape_cast %39 : vector<1x16xf32> to vector<1x1x16xf32>
    tpu.vector_store %arg6[%c1_43, %c24_44, %c128_45], %42 {strides = array<i32>} : memref<3x32x272xf32, #tpu.memory_space<vmem>>, vector<1x1x16xf32>,
    %c0_46 = arith.constant 0 : index
    %c2 = arith.constant 2 : index
    %c0_47 = arith.constant 0 : index
    %c0_48 = arith.constant 0 : index
    %43 = vector.load %arg2[%c0_46, %c2, %c0_47, %c0_48] : memref<1x3x16x16xf32, #tpu.memory_space<vmem>>, vector<1x1x16x16xf32>
    %44 = vector.shape_cast %43 : vector<1x1x16x16xf32> to vector<16x16xf32>
    %c2_49 = arith.constant 2 : index
    %c8_50 = arith.constant 8 : index
    %c128_51 = arith.constant 128 : index
    %45 = vector.load %arg6[%c2_49, %c8_50, %c128_51] : memref<3x32x272xf32, #tpu.memory_space<vmem>>, vector<1x16x16xf32>
    %46 = vector.shape_cast %45 : vector<1x16x16xf32> to vector<16x16xf32>
    %47 = vector.shape_cast %44 : vector<16x16xf32> to vector<1x16x16xf32>
    tpu.vector_store %arg6[%c2_49, %c8_50, %c128_51], %47 {strides = array<i32>} : memref<3x32x272xf32, #tpu.memory_space<vmem>>, vector<1x16x16xf32>,
    %c2_52 = arith.constant 2 : index
    %c8_53 = arith.constant 8 : index
    %c127_54 = arith.constant 127 : index
    %48 = vector.load %arg6[%c2_52, %c8_53, %c127_54] : memref<3x32x272xf32, #tpu.memory_space<vmem>>, vector<1x16x1xf32>
    %49 = vector.shape_cast %48 : vector<1x16x1xf32> to vector<16x1xf32>
    %50 = vector.shape_cast %0 : vector<16x1xf32> to vector<1x16x1xf32>
    tpu.vector_store %arg6[%c2_52, %c8_53, %c127_54], %50 {strides = array<i32>} : memref<3x32x272xf32, #tpu.memory_space<vmem>>, vector<1x16x1xf32>,
    %c2_55 = arith.constant 2 : index
    %c8_56 = arith.constant 8 : index
    %c144_57 = arith.constant 144 : index
    %51 = vector.load %arg6[%c2_55, %c8_56, %c144_57] : memref<3x32x272xf32, #tpu.memory_space<vmem>>, vector<1x16x1xf32>
    %52 = vector.shape_cast %51 : vector<1x16x1xf32> to vector<16x1xf32>
    %53 = vector.shape_cast %0 : vector<16x1xf32> to vector<1x16x1xf32>
    tpu.vector_store %arg6[%c2_55, %c8_56, %c144_57], %53 {strides = array<i32>} : memref<3x32x272xf32, #tpu.memory_space<vmem>>, vector<1x16x1xf32>,
    %c0_58 = arith.constant 0 : index
    %c0_59 = arith.constant 0 : index
    %c2_60 = arith.constant 2 : index
    %c0_61 = arith.constant 0 : index
    %54 = vector.load %arg3[%c0_58, %c0_59, %c2_60, %c0_61] : memref<1x1x3x16xf32, #tpu.memory_space<vmem>>, vector<1x1x1x16xf32>
    %55 = vector.shape_cast %54 : vector<1x1x1x16xf32> to vector<1x16xf32>
    %c2_62 = arith.constant 2 : index
    %c7_63 = arith.constant 7 : index
    %c128_64 = arith.constant 128 : index
    %56 = vector.load %arg6[%c2_62, %c7_63, %c128_64] : memref<3x32x272xf32, #tpu.memory_space<vmem>>, vector<1x1x16xf32>
    %57 = vector.shape_cast %56 : vector<1x1x16xf32> to vector<1x16xf32>
    %58 = vector.shape_cast %55 : vector<1x16xf32> to vector<1x1x16xf32>
    tpu.vector_store %arg6[%c2_62, %c7_63, %c128_64], %58 {strides = array<i32>} : memref<3x32x272xf32, #tpu.memory_space<vmem>>, vector<1x1x16xf32>,
    %c0_65 = arith.constant 0 : index
    %c0_66 = arith.constant 0 : index
    %c2_67 = arith.constant 2 : index
    %c0_68 = arith.constant 0 : index
    %59 = vector.load %arg4[%c0_65, %c0_66, %c2_67, %c0_68] : memref<1x1x3x16xf32, #tpu.memory_space<vmem>>, vector<1x1x1x16xf32>
    %60 = vector.shape_cast %59 : vector<1x1x1x16xf32> to vector<1x16xf32>
    %c2_69 = arith.constant 2 : index
    %c24_70 = arith.constant 24 : index
    %c128_71 = arith.constant 128 : index
    %61 = vector.load %arg6[%c2_69, %c24_70, %c128_71] : memref<3x32x272xf32, #tpu.memory_space<vmem>>, vector<1x1x16xf32>
    %62 = vector.shape_cast %61 : vector<1x1x16xf32> to vector<1x16xf32>
    %63 = vector.shape_cast %60 : vector<1x16xf32> to vector<1x1x16xf32>
    tpu.vector_store %arg6[%c2_69, %c24_70, %c128_71], %63 {strides = array<i32>} : memref<3x32x272xf32, #tpu.memory_space<vmem>>, vector<1x1x16xf32>,
    %c0_72 = arith.constant 0 : index
    %c8_73 = arith.constant 8 : index
    %c129 = arith.constant 129 : index
    %64 = vector.load %arg6[%c0_72, %c8_73, %c129] : memref<3x32x272xf32, #tpu.memory_space<vmem>>, vector<1x16x16xf32>
    %65 = vector.shape_cast %64 : vector<1x16x16xf32> to vector<16x16xf32>
    %c0_74 = arith.constant 0 : index
    %c8_75 = arith.constant 8 : index
    %c127_76 = arith.constant 127 : index
    %66 = vector.load %arg6[%c0_74, %c8_75, %c127_76] : memref<3x32x272xf32, #tpu.memory_space<vmem>>, vector<1x16x16xf32>
    %67 = vector.shape_cast %66 : vector<1x16x16xf32> to vector<16x16xf32>
    %68 = arith.subf %65, %67 : vector<16x16xf32>
    %c0_77 = arith.constant 0 : index
    %c9 = arith.constant 9 : index
    %c128_78 = arith.constant 128 : index
    %69 = vector.load %arg6[%c0_77, %c9, %c128_78] : memref<3x32x272xf32, #tpu.memory_space<vmem>>, vector<1x16x16xf32>
    %70 = vector.shape_cast %69 : vector<1x16x16xf32> to vector<16x16xf32>
    %c0_79 = arith.constant 0 : index
    %c7_80 = arith.constant 7 : index
    %c128_81 = arith.constant 128 : index
    %71 = vector.load %arg6[%c0_79, %c7_80, %c128_81] : memref<3x32x272xf32, #tpu.memory_space<vmem>>, vector<1x16x16xf32>
    %72 = vector.shape_cast %71 : vector<1x16x16xf32> to vector<16x16xf32>
    %73 = arith.subf %70, %72 : vector<16x16xf32>
    %c1_82 = arith.constant 1 : index
    %c8_83 = arith.constant 8 : index
    %c129_84 = arith.constant 129 : index
    %74 = vector.load %arg6[%c1_82, %c8_83, %c129_84] : memref<3x32x272xf32, #tpu.memory_space<vmem>>, vector<1x16x16xf32>
    %75 = vector.shape_cast %74 : vector<1x16x16xf32> to vector<16x16xf32>
    %c1_85 = arith.constant 1 : index
    %c8_86 = arith.constant 8 : index
    %c127_87 = arith.constant 127 : index
    %76 = vector.load %arg6[%c1_85, %c8_86, %c127_87] : memref<3x32x272xf32, #tpu.memory_space<vmem>>, vector<1x16x16xf32>
    %77 = vector.shape_cast %76 : vector<1x16x16xf32> to vector<16x16xf32>
    %78 = arith.subf %75, %77 : vector<16x16xf32>
    %c1_88 = arith.constant 1 : index
    %c9_89 = arith.constant 9 : index
    %c128_90 = arith.constant 128 : index
    %79 = vector.load %arg6[%c1_88, %c9_89, %c128_90] : memref<3x32x272xf32, #tpu.memory_space<vmem>>, vector<1x16x16xf32>
    %80 = vector.shape_cast %79 : vector<1x16x16xf32> to vector<16x16xf32>
    %c1_91 = arith.constant 1 : index
    %c7_92 = arith.constant 7 : index
    %c128_93 = arith.constant 128 : index
    %81 = vector.load %arg6[%c1_91, %c7_92, %c128_93] : memref<3x32x272xf32, #tpu.memory_space<vmem>>, vector<1x16x16xf32>
    %82 = vector.shape_cast %81 : vector<1x16x16xf32> to vector<16x16xf32>
    %83 = arith.subf %80, %82 : vector<16x16xf32>
    %c2_94 = arith.constant 2 : index
    %c8_95 = arith.constant 8 : index
    %c129_96 = arith.constant 129 : index
    %84 = vector.load %arg6[%c2_94, %c8_95, %c129_96] : memref<3x32x272xf32, #tpu.memory_space<vmem>>, vector<1x16x16xf32>
    %85 = vector.shape_cast %84 : vector<1x16x16xf32> to vector<16x16xf32>
    %c2_97 = arith.constant 2 : index
    %c8_98 = arith.constant 8 : index
    %c127_99 = arith.constant 127 : index
    %86 = vector.load %arg6[%c2_97, %c8_98, %c127_99] : memref<3x32x272xf32, #tpu.memory_space<vmem>>, vector<1x16x16xf32>
    %87 = vector.shape_cast %86 : vector<1x16x16xf32> to vector<16x16xf32>
    %88 = arith.subf %85, %87 : vector<16x16xf32>
    %c2_100 = arith.constant 2 : index
    %c9_101 = arith.constant 9 : index
    %c128_102 = arith.constant 128 : index
    %89 = vector.load %arg6[%c2_100, %c9_101, %c128_102] : memref<3x32x272xf32, #tpu.memory_space<vmem>>, vector<1x16x16xf32>
    %90 = vector.shape_cast %89 : vector<1x16x16xf32> to vector<16x16xf32>
    %c2_103 = arith.constant 2 : index
    %c7_104 = arith.constant 7 : index
    %c128_105 = arith.constant 128 : index
    %91 = vector.load %arg6[%c2_103, %c7_104, %c128_105] : memref<3x32x272xf32, #tpu.memory_space<vmem>>, vector<1x16x16xf32>
    %92 = vector.shape_cast %91 : vector<1x16x16xf32> to vector<16x16xf32>
    %93 = arith.subf %90, %92 : vector<16x16xf32>
    %94 = arith.mulf %88, %83 : vector<16x16xf32>
    %95 = arith.mulf %78, %93 : vector<16x16xf32>
    %96 = arith.subf %94, %95 : vector<16x16xf32>
    %c0_106 = arith.constant 0 : index
    %c0_107 = arith.constant 0 : index
    %c0_108 = arith.constant 0 : index
    %c0_109 = arith.constant 0 : index
    %97 = vector.load %arg5[%c0_106, %c0_107, %c0_108, %c0_109] : memref<1x3x16x16xf32, #tpu.memory_space<vmem>>, vector<1x1x16x16xf32>
    %98 = vector.shape_cast %97 : vector<1x1x16x16xf32> to vector<16x16xf32>
    %99 = vector.shape_cast %96 : vector<16x16xf32> to vector<1x1x16x16xf32>
    tpu.vector_store %arg5[%c0_106, %c0_107, %c0_108, %c0_109], %99 {strides = array<i32>} : memref<1x3x16x16xf32, #tpu.memory_space<vmem>>, vector<1x1x16x16xf32>,
    %100 = arith.mulf %68, %93 : vector<16x16xf32>
    %101 = arith.mulf %88, %73 : vector<16x16xf32>
    %102 = arith.subf %100, %101 : vector<16x16xf32>
    %c0_110 = arith.constant 0 : index
    %c1_111 = arith.constant 1 : index
    %c0_112 = arith.constant 0 : index
    %c0_113 = arith.constant 0 : index
    %103 = vector.load %arg5[%c0_110, %c1_111, %c0_112, %c0_113] : memref<1x3x16x16xf32, #tpu.memory_space<vmem>>, vector<1x1x16x16xf32>
    %104 = vector.shape_cast %103 : vector<1x1x16x16xf32> to vector<16x16xf32>
    %105 = vector.shape_cast %102 : vector<16x16xf32> to vector<1x1x16x16xf32>
    tpu.vector_store %arg5[%c0_110, %c1_111, %c0_112, %c0_113], %105 {strides = array<i32>} : memref<1x3x16x16xf32, #tpu.memory_space<vmem>>, vector<1x1x16x16xf32>,
    %106 = arith.mulf %78, %73 : vector<16x16xf32>
    %107 = arith.mulf %68, %83 : vector<16x16xf32>
    %108 = arith.subf %106, %107 : vector<16x16xf32>
    %c0_114 = arith.constant 0 : index
    %c2_115 = arith.constant 2 : index
    %c0_116 = arith.constant 0 : index
    %c0_117 = arith.constant 0 : index
    %109 = vector.load %arg5[%c0_114, %c2_115, %c0_116, %c0_117] : memref<1x3x16x16xf32, #tpu.memory_space<vmem>>, vector<1x1x16x16xf32>
    %110 = vector.shape_cast %109 : vector<1x1x16x16xf32> to vector<16x16xf32>
    %111 = vector.shape_cast %108 : vector<16x16xf32> to vector<1x1x16x16xf32>
    tpu.vector_store %arg5[%c0_114, %c2_115, %c0_116, %c0_117], %111 {strides = array<i32>} : memref<1x3x16x16xf32, #tpu.memory_space<vmem>>, vector<1x1x16x16xf32>,
    return
  }
  func.func @transform_0(%arg0: i32, %arg1: i32) -> (i32, i32, i32, i32) {
    %c0_i32 = arith.constant 0 : i32
    %c0_i32_0 = arith.constant 0 : i32
    %c0_i32_1 = arith.constant 0 : i32
    return %arg0, %c0_i32, %arg1, %c0_i32_0 : i32, i32, i32, i32
  }
  func.func @transform_1(%arg0: i32, %arg1: i32) -> (i32, i32, i32, i32) {
    %c0_i32 = arith.constant 0 : i32
    %c0_i32_0 = arith.constant 0 : i32
    %c0_i32_1 = arith.constant 0 : i32
    return %arg0, %arg1, %c0_i32, %c0_i32_0 : i32, i32, i32, i32
  }
  func.func @transform_2(%arg0: i32, %arg1: i32) -> (i32, i32, i32, i32) {
    %c0_i32 = arith.constant 0 : i32
    %c0_i32_0 = arith.constant 0 : i32
    %c0_i32_1 = arith.constant 0 : i32
    return %arg0, %arg1, %c0_i32, %c0_i32_0 : i32, i32, i32, i32
  }
  func.func @transform_3(%arg0: i32, %arg1: i32) -> (i32, i32, i32, i32) {
    %c0_i32 = arith.constant 0 : i32
    %c0_i32_0 = arith.constant 0 : i32
    %c0_i32_1 = arith.constant 0 : i32
    return %arg0, %c0_i32, %arg1, %c0_i32_0 : i32, i32, i32, i32
  }
}

</mosaic_0001>

<llo_original>
// kernel: tpu_custom_call.1
$region0: #{tpu_custom_call.1}
  #allocation0 [shape = 'u32[]', space=smem, size = 0x4, offset = 0x4, fixed_abs, tag = 'smem constant byte address 0x4 - core index']
  #allocation1 [shape = 'u32[144,128]{1,0:T(1,128)}', space=vmem, size = 0x12000, scoped, tag = 'internal scratch']
  #allocation2 [shape = 'f32[3,32,272]{2,1,0:T(8,128)}', space=vmem, size = 0x24000, scoped, tag = 'scratch operand']
  %s0 = inlined_call_operand.hbm [shape: f32[2,3,16,16], index: 0, kind: input, shape index: {}]
  %s1 = inlined_call_operand.vmem [shape: f32[2,1,3,16], index: 1, kind: input, shape index: {}]
  %s2 = inlined_call_operand.vmem [shape: f32[2,1,3,16], index: 2, kind: input, shape index: {}]
  %s3 = inlined_call_operand.hbm [shape: f32[2,3,16,16], index: 3, kind: output, shape index: {}]
  %s4 = sld [smem:[#allocation0]]
  $region49: #{tpu_custom_call.1} parent=0
    _
  %s6 = ssub.s32 1, %s4
  %s7 = scalar_select 0, %s6, %s4
  $region1: #{tpu_custom_call.1} parent=0
    #allocation3 [shape = 'u8[49152]{0}', space=vmem, size = 0xc000, scoped, tag = 'input window, operand 0']
    #allocation4 [shape = 's32[2]{0}', space=sflag, size = 0x8, scoped, tag = 'scoped memory for tpu_custom_call.1']
    #allocation5 [shape = 's32[2]{0}', space=sflag, size = 0x8, scoped, tag = 'scoped memory for tpu_custom_call.1']
    #allocation6 [shape = 'u8[49152]{0}', space=vmem, size = 0xc000, scoped, tag = 'output window, operand 0']
    %8 = vsyncpa [#allocation4], 0
    %s9 = scalar_lea.sflag [#allocation4], 1
    %10 = vsyncpa %s9, 0
    %11 = vsyncpa [#allocation5], 0
    %s12 = scalar_lea.sflag [#allocation5], 1
    %13 = vsyncpa %s12, 0
    loop: start=0, step=1, limit=4
    $region2: #{tpu_custom_call.1} parent=1 // loop_pre_header
      _
    $region3: #{tpu_custom_call.1} parent=1 // loop_header
      %s15 = sphi 0, %s19
      %p16 = scmp.ge.s32.totalorder %s15, 4
      %s22 = sphi 0, %s34
      %s23 = sphi 0, %s30
      %s24 = sphi 0, %s22
      %s25 = sphi 0, %s23
      %s26 = sphi 0, %s24
      %s27 = sphi 0, %s25
      %s39 = sphi 0, %s41
      %s42 = sphi 0, %s39
      %s43 = sphi 0, %s42
      %s59 = sphi 0, %s43
      %s67 = sphi 0, %s69
      %s70 = sphi 0, %s67
      %s71 = sphi 0, %s70
      %s87 = sphi 0, %s71
      %s95 = sphi 0, %s97
      %s98 = sphi 0, %s95
      %s99 = sphi 0, %s98
      %s115 = sphi 0, %s99
      %s123 = sphi 0, %s125
      %s126 = sphi 0, %s123
      %s127 = sphi 0, %s126
      %s143 = sphi 0, %s127
    $region4: #{tpu_custom_call.1} parent=1 // loop_header_branch
      %18 = sbr.rel (%p16) target = $region8
    $region5: #{tpu_custom_call.1} parent=1 // loop_body
      %s20 = ssub.s32 %s15, 1
      %s21 = ssub.s32 %s15, 2
      %s28 = sadd.s32 1, %s23
      %p29 = scmp.ge.s32.totalorder %s28, 1
      %s30 = scalar_select %p29, 0, %s28
      %s31 = sadd.s32 1, %s22
      %s32 = scalar_select %p29, %s31, %s22
      %p33 = scmp.ge.s32.totalorder %s32, 2
      %s34 = scalar_select %p33, 0, %s32
      %s35 = ssub.s32 %s22, %s34
      %s36 = ssub.s32 %s23, %s30
      %s37 = sor.u32 %s35, %s36
      %p38 = scmp.eq.s32.totalorder %s37, 0
      %s40 = sadd.s32 %s39, 1
      %s41 = scalar_select %p38, %s39, %s40
      %p44 = pneg %p38
      %p45 = scmp.eq.s32.totalorder %s15, 1
      %p46 = por %p44, %p45
      %p47 = scmp.ne.s32.totalorder %s39, %s42
      %p48 = scmp.eq.s32.totalorder %s15, 0
      %p49 = por %p47, %p48
      %p50 = scmp.ne.s32.totalorder %s39, %s42
      %p51 = scmp.eq.s32.totalorder %s20, 1
      %p52 = por %p50, %p51
      %p53 = scmp.ne.s32.totalorder %s42, %s43
      %p54 = scmp.eq.s32.totalorder %s20, 0
      %p55 = por %p53, %p54
      %p56 = scmp.ne.s32.totalorder %s42, %s43
      %p57 = scmp.eq.s32.totalorder %s21, 1
      %p58 = por %p56, %p57
      %p60 = scmp.ne.s32.totalorder %s43, %s59
      %p61 = scmp.eq.s32.totalorder %s21, 0
      %p62 = por %p60, %p61
      %s63 = ssub.s32 %s22, %s34
      %s64 = ssub.s32 %s23, %s30
      %s65 = sor.u32 %s63, %s64
      %p66 = scmp.eq.s32.totalorder %s65, 0
      %s68 = sadd.s32 %s67, 1
      %s69 = scalar_select %p66, %s67, %s68
      %p72 = pneg %p66
      %p73 = scmp.eq.s32.totalorder %s15, 1
      %p74 = por %p72, %p73
      %p75 = scmp.ne.s32.totalorder %s67, %s70
      %p76 = scmp.eq.s32.totalorder %s15, 0
      %p77 = por %p75, %p76
      %p78 = scmp.ne.s32.totalorder %s67, %s70
      %p79 = scmp.eq.s32.totalorder %s20, 1
      %p80 = por %p78, %p79
      %p81 = scmp.ne.s32.totalorder %s70, %s71
      %p82 = scmp.eq.s32.totalorder %s20, 0
      %p83 = por %p81, %p82
      %p84 = scmp.ne.s32.totalorder %s70, %s71
      %p85 = scmp.eq.s32.totalorder %s21, 1
      %p86 = por %p84, %p85
      %p88 = scmp.ne.s32.totalorder %s71, %s87
      %p89 = scmp.eq.s32.totalorder %s21, 0
      %p90 = por %p88, %p89
      %s91 = ssub.s32 %s22, %s34
      %s92 = ssub.s32 %s23, %s30
      %s93 = sor.u32 %s91, %s92
      %p94 = scmp.eq.s32.totalorder %s93, 0
      %s96 = sadd.s32 %s95, 1
      %s97 = scalar_select %p94, %s95, %s96
      %p100 = pneg %p94
      %p101 = scmp.eq.s32.totalorder %s15, 1
      %p102 = por %p100, %p101
      %p103 = scmp.ne.s32.totalorder %s95, %s98
      %p104 = scmp.eq.s32.totalorder %s15, 0
      %p105 = por %p103, %p104
      %p106 = scmp.ne.s32.totalorder %s95, %s98
      %p107 = scmp.eq.s32.totalorder %s20, 1
      %p108 = por %p106, %p107
      %p109 = scmp.ne.s32.totalorder %s98, %s99
      %p110 = scmp.eq.s32.totalorder %s20, 0
      %p111 = por %p109, %p110
      %p112 = scmp.ne.s32.totalorder %s98, %s99
      %p113 = scmp.eq.s32.totalorder %s21, 1
      %p114 = por %p112, %p113
      %p116 = scmp.ne.s32.totalorder %s99, %s115
      %p117 = scmp.eq.s32.totalorder %s21, 0
      %p118 = por %p116, %p117
      %s119 = ssub.s32 %s22, %s34
      %s120 = ssub.s32 %s23, %s30
      %s121 = sor.u32 %s119, %s120
      %p122 = scmp.eq.s32.totalorder %s121, 0
      %s124 = sadd.s32 %s123, 1
      %s125 = scalar_select %p122, %s123, %s124
      %p128 = pneg %p122
      %p129 = scmp.eq.s32.totalorder %s15, 1
      %p130 = por %p128, %p129
      %p131 = scmp.ne.s32.totalorder %s123, %s126
      %p132 = scmp.eq.s32.totalorder %s15, 0
      %p133 = por %p131, %p132
      %p134 = scmp.ne.s32.totalorder %s123, %s126
      %p135 = scmp.eq.s32.totalorder %s20, 1
      %p136 = por %p134, %p135
      %p137 = scmp.ne.s32.totalorder %s126, %s127
      %p138 = scmp.eq.s32.totalorder %s20, 0
      %p139 = por %p137, %p138
      %p140 = scmp.ne.s32.totalorder %s126, %s127
      %p141 = scmp.eq.s32.totalorder %s21, 1
      %p142 = por %p140, %p141
      %p144 = scmp.ne.s32.totalorder %s127, %s143
      %p145 = scmp.eq.s32.totalorder %s21, 0
      %p146 = por %p144, %p145
      %p147 = scmp.le.s32.totalorder 1, %s15
      %p148 = scmp.lt.s32.totalorder %s15, 3
      %p149 = pnand %p147, %p148
      %p150 = pneg %p149
      // Predicated region
      $region9: #{tpu_custom_call.1} parent=5 // pred_check
        _
      $region10: #{tpu_custom_call.1} parent=5 // pred_check_branch
        %152 = sbr.rel (%p149) target = $region12
      $region11: #{tpu_custom_call.1} parent=5 // pred_region
        %s153 = ssub.s32 %s15, 1
      $region12: #{tpu_custom_call.1} parent=5 // pred_fallthru
        _
      %p154 = scmp.lt.s32.totalorder %s15, 2
      // Predicated region
      $region13: #{tpu_custom_call.1} parent=5 // pred_check
        %p155 = pneg %p154
      $region14: #{tpu_custom_call.1} parent=5 // pred_check_branch
        %157 = sbr.rel (%p155) target = $region16
      $region15: #{tpu_custom_call.1} parent=5 // pred_region
        // Predicated region
        $region17: #{tpu_custom_call.1} parent=15 // pred_check
          %p158 = pneg %p49
        $region18: #{tpu_custom_call.1} parent=15 // pred_check_branch
          %160 = sbr.rel (%p158) target = $region20
        $region19: #{tpu_custom_call.1} parent=15 // pred_region
          %s161 = sand.u32 %s39, 1
          %s162 = scalar_lea.sflag [#allocation4], %s161
          %s163 = sand.u32 %s39, 1
          %s164 = smul.addr %s163, 48
          %s165 = scalar_lea.vmem [#allocation3], %s164
          %s166 = smul.u32 2, %s23
          %s168 = ssub.s32 768, 768
          %169 = vsyncadd %s162, %s168
          %s170 = smul.addr %s22, 6
          %s171 = sadd.s32 %s166, %s170
          %s172 = smul.addr %s171, 128
          %s173 = scalar_lea.hbm %s0, %s172
          %s174 = sshll.u32 %s165, 4
          %s175 = int_to_ptr.vmem [resolvable:$true] %s174
          %180 = dma.hbm_to_vmem [thread:$0]  %s173, 768, %s175, %s162, 128, 128, 8
        $region20: #{tpu_custom_call.1} parent=15 // pred_fallthru
          _
        // Predicated region
        $region21: #{tpu_custom_call.1} parent=15 // pred_check
          %p181 = pneg %p77
        $region22: #{tpu_custom_call.1} parent=15 // pred_check_branch
          %183 = sbr.rel (%p181) target = $region24
        $region23: #{tpu_custom_call.1} parent=15 // pred_region
          %p184 = scmp.lt.s32.totalorder %s22, 1
          %s185 = scalar_select %p184, %s22, 1
          %p186 = scmp.lt.s32.totalorder %s23, 0
          %s187 = scalar_select %p186, %s23, 0
          %s188 = sadd.s32 %s187, %s185
          %s189 = smul.addr %s188, 4
          %s190 = scalar_lea.vmem %s1, %s189
        $region24: #{tpu_custom_call.1} parent=15 // pred_fallthru
          _
        // Predicated region
        $region25: #{tpu_custom_call.1} parent=15 // pred_check
          %p191 = pneg %p105
        $region26: #{tpu_custom_call.1} parent=15 // pred_check_branch
          %193 = sbr.rel (%p191) target = $region28
        $region27: #{tpu_custom_call.1} parent=15 // pred_region
          %p194 = scmp.lt.s32.totalorder %s22, 1
          %s195 = scalar_select %p194, %s22, 1
          %p196 = scmp.lt.s32.totalorder %s23, 0
          %s197 = scalar_select %p196, %s23, 0
          %s198 = sadd.s32 %s197, %s195
          %s199 = smul.addr %s198, 4
          %s200 = scalar_lea.vmem %s2, %s199
        $region28: #{tpu_custom_call.1} parent=15 // pred_fallthru
          _
      $region16: #{tpu_custom_call.1} parent=5 // pred_fallthru
        _
      %p201 = scmp.le.s32.totalorder 1, %s15
      %p202 = scmp.lt.s32.totalorder %s15, 3
      %p203 = pnand %p201, %p202
      %p204 = pneg %p203
      // Predicated region
      $region29: #{tpu_custom_call.1} parent=5 // pred_check
        _
      $region30: #{tpu_custom_call.1} parent=5 // pred_check_branch
        %206 = sbr.rel (%p203) target = $region32
      $region31: #{tpu_custom_call.1} parent=5 // pred_region
        %s207 = ssub.s32 %s15, 1
        %s208 = sand.u32 %s42, 1
        %s209 = scalar_lea.sflag [#allocation4], %s208
        %s210 = sand.u32 %s42, 1
        %s211 = smul.addr %s210, 48
        %s212 = scalar_lea.vmem [#allocation3], %s211
        // Predicated region
        $region33: #{tpu_custom_call.1} parent=31 // pred_check
          %p213 = pneg %p55
        $region34: #{tpu_custom_call.1} parent=31 // pred_check_branch
          %215 = sbr.rel (%p213) target = $region36
        $region35: #{tpu_custom_call.1} parent=31 // pred_region
          %216 = dma.done %s209, 768
        $region36: #{tpu_custom_call.1} parent=31 // pred_fallthru
          _
        %s217 = sand.u32 %s42, 1
        %s218 = scalar_lea.sflag [#allocation4], %s217
        %s219 = sand.u32 %s42, 1
        %s220 = smul.addr %s219, 48
        %s221 = scalar_lea.vmem [#allocation3], %s220
        %p222 = pneg %p55
        %p223 = pneg %p52
        %p224 = scmp.lt.s32.totalorder %s24, 1
        %s225 = scalar_select %p224, %s24, 1
        %p226 = scmp.lt.s32.totalorder %s25, 0
        %s227 = scalar_select %p226, %s25, 0
        %s228 = sadd.s32 %s227, %s225
        %s229 = smul.addr %s228, 4
        %s230 = scalar_lea.vmem %s1, %s229
        %p231 = pneg %p83
        %p232 = pneg %p80
        %p233 = scmp.lt.s32.totalorder %s24, 1
        %s234 = scalar_select %p233, %s24, 1
        %p235 = scmp.lt.s32.totalorder %s25, 0
        %s236 = scalar_select %p235, %s25, 0
        %s237 = sadd.s32 %s236, %s234
        %s238 = smul.addr %s237, 4
        %s239 = scalar_lea.vmem %s2, %s238
        %p240 = pneg %p111
        %p241 = pneg %p108
        %p242 = pneg %p139
        %p243 = pneg %p136
        %s244 = sand.u32 %s126, 1
        %s245 = scalar_lea.sflag [#allocation5], %s244
        %s246 = sand.u32 %s126, 1
        %s247 = smul.addr %s246, 48
        %s248 = scalar_lea.vmem [#allocation6], %s247
        %s249 = smul.u32 2, %s25
        %p250 = scmp.lt.s32.totalorder %s24, 1
        %s251 = scalar_select %p250, %s24, 1
        %p252 = scmp.lt.s32.totalorder %s25, 0
        %s253 = scalar_select %p252, %s25, 0
        %s254 = sadd.s32 %s253, %s251
        %s255 = smul.addr %s254, 4
        %s256 = scalar_lea.vmem %s1, %s255
        %p257 = scmp.lt.s32.totalorder %s24, 1
        %s258 = scalar_select %p257, %s24, 1
        %p259 = scmp.lt.s32.totalorder %s25, 0
        %s260 = scalar_select %p259, %s25, 0
        %s261 = sadd.s32 %s260, %s258
        %s262 = smul.addr %s261, 4
        %s263 = scalar_lea.vmem %s2, %s262
        %s264 = smul.u32 2, %s25
        %v265 = vld [vmem:[%s212] sm:$0xff]
        %v266 = vld [vmem:[%s212 + $0x8] sm:$0xff]
        %vm267 = vcmask 130048
        %268 = vst.msk [vmem:[#allocation2 + $0x20] sm:$0xff] %vm267, %v265
        %269 = vst.msk [vmem:[#allocation2 + $0x38] sm:$0xff] %vm267, %v266
        %vm270 = vcmask 1048568
        %271 = vst.msk [vmem:[#allocation2 + $0x18] sm:$0xff] %vm270, 0.0
        %272 = vst.msk [vmem:[#allocation2 + $0x30] sm:$0xff] %vm270, 0.0
        %vm273 = vcmask 138368
        %274 = vst.msk [vmem:[#allocation2 + $0x20] sm:$0xff] %vm273, 0.0
        %275 = vst.msk [vmem:[#allocation2 + $0x38] sm:$0xff] %vm273, 0.0
        %v276 = vld [vmem:[%s256] sm:$0x1]
        %vm277 = vcmask 122880
        %278 = vst.msk [vmem:[#allocation2 + $0xf] sm:$0x1] %vm277, %v276
        %v279 = vld [vmem:[%s263] sm:$0x1]
        %280 = vst.msk [vmem:[#allocation2 + $0x50] sm:$0x1] %vm277, %v279
        %s281 = scalar_lea.vmem %s212, 16 [#allocation3]
        %v282 = vld [vmem:[%s281] sm:$0xff]
        %v283 = vld [vmem:[%s281 + $0x8] sm:$0xff]
        %s284 = scalar_lea.vmem [#allocation2], 96
        %285 = vst.msk [vmem:[%s284 + $0x20] sm:$0xff] %vm267, %v282
        %286 = vst.msk [vmem:[%s284 + $0x38] sm:$0xff] %vm267, %v283
        %287 = vst.msk [vmem:[%s284 + $0x18] sm:$0xff] %vm270, 0.0
        %288 = vst.msk [vmem:[%s284 + $0x30] sm:$0xff] %vm270, 0.0
        %289 = vst.msk [vmem:[%s284 + $0x20] sm:$0xff] %vm273, 0.0
        %290 = vst.msk [vmem:[%s284 + $0x38] sm:$0xff] %vm273, 0.0
        %v291 = vld [vmem:[%s256 + $0x1] sm:$0x1]
        %292 = vst.msk [vmem:[%s284 + $0xf] sm:$0x1] %vm277, %v291
        %v293 = vld [vmem:[%s263 + $0x1] sm:$0x1]
        %294 = vst.msk [vmem:[%s284 + $0x50] sm:$0x1] %vm277, %v293
        %s295 = scalar_lea.vmem %s212, 32 [#allocation3]
        %v296 = vld [vmem:[%s295] sm:$0xff]
        %v297 = vld [vmem:[%s295 + $0x8] sm:$0xff]
        %s298 = scalar_lea.vmem [#allocation2], 192
        %299 = vst.msk [vmem:[%s298 + $0x20] sm:$0xff] %vm267, %v296
        %300 = vst.msk [vmem:[%s298 + $0x38] sm:$0xff] %vm267, %v297
        %301 = vst.msk [vmem:[%s298 + $0x18] sm:$0xff] %vm270, 0.0
        %302 = vst.msk [vmem:[%s298 + $0x30] sm:$0xff] %vm270, 0.0
        %303 = vst.msk [vmem:[%s298 + $0x20] sm:$0xff] %vm273, 0.0
        %304 = vst.msk [vmem:[%s298 + $0x38] sm:$0xff] %vm273, 0.0
        %v305 = vld [vmem:[%s256 + $0x2] sm:$0x1]
        %306 = vst.msk [vmem:[%s298 + $0xf] sm:$0x1] %vm277, %v305
        %v307 = vld [vmem:[%s263 + $0x2] sm:$0x1]
        %308 = vst.msk [vmem:[%s298 + $0x50] sm:$0x1] %vm277, %v307
        %v309 = vld [vmem:[#allocation2 + $0x20] sm:$0xff]
        %v310 = vld [vmem:[#allocation2 + $0x38] sm:$0xff]
        %v311 = vld [vmem:[#allocation2 + $0x18] sm:$0xff]
        %v312 = vld [vmem:[#allocation2 + $0x30] sm:$0xff]
        %317 = vrot.lane.b32.xlu0 %v311, 2
        %v318 = vpop.permute.xlu0 %317
        %319 = vrot.lane.b32.xlu0 %v309, 2
        %v320 = vpop.permute.xlu0 %319
        %321 = vrot.lane.b32.xlu0 %v312, 2
        %v322 = vpop.permute.xlu0 %321
        %323 = vrot.lane.b32.xlu0 %v310, 2
        %v324 = vpop.permute.xlu0 %323
        %vm325 = vcmask 15360
        %v326 = vsel %vm325, %v318, %v320
        %v327 = vsel %vm325, %v322, %v324
        %v330 = vsub.f32 %v309, %v326
        %v331 = vsub.f32 %v310, %v327
        %v332 = vld [vmem:[#allocation2 + $0x20] sm:$0xfe]
        %v333 = vld [vmem:[#allocation2 + $0x50] sm:$0x1]
        %v334 = vld [vmem:[#allocation2 + $0x8] sm:$0x80]
        %v335 = vld [vmem:[#allocation2 + $0x38] sm:$0x7f]
        %vm338 = vcmask 1041408
        %v339 = vrot.slane %v334, 6
        %v340 = vrot.slane %v309, 6
        %v341 = vsel %vm338, %v339, %v340
        %v342 = vrot.slane %v335, 6
        %v343 = vsel %vm338, %v340, %v342
        %v347 = vsub.f32 %v332, %v341
        %v348 = vsub.f32 %v310, %v343
        %v349 = vsub.f32 %v333, %v342
        %v350 = vld [vmem:[%s284 + $0x20] sm:$0xff]
        %v351 = vld [vmem:[%s284 + $0x38] sm:$0xff]
        %v352 = vld [vmem:[%s284 + $0x18] sm:$0xff]
        %v353 = vld [vmem:[%s284 + $0x30] sm:$0xff]
        %358 = vrot.lane.b32.xlu0 %v352, 2
        %v359 = vpop.permute.xlu0 %358
        %360 = vrot.lane.b32.xlu0 %v350, 2
        %v361 = vpop.permute.xlu0 %360
        %362 = vrot.lane.b32.xlu0 %v353, 2
        %v363 = vpop.permute.xlu0 %362
        %364 = vrot.lane.b32.xlu0 %v351, 2
        %v365 = vpop.permute.xlu0 %364
        %v366 = vsel %vm325, %v359, %v361
        %v367 = vsel %vm325, %v363, %v365
        %v370 = vsub.f32 %v350, %v366
        %v371 = vsub.f32 %v351, %v367
        %v372 = vld [vmem:[%s284 + $0x20] sm:$0xfe]
        %v373 = vld [vmem:[%s284 + $0x50] sm:$0x1]
        %v374 = vld [vmem:[%s284 + $0x8] sm:$0x80]
        %v375 = vld [vmem:[%s284 + $0x38] sm:$0x7f]
        %v378 = vrot.slane %v374, 6
        %v379 = vrot.slane %v350, 6
        %v380 = vsel %vm338, %v378, %v379
        %v381 = vrot.slane %v375, 6
        %v382 = vsel %vm338, %v379, %v381
        %v386 = vsub.f32 %v372, %v380
        %v387 = vsub.f32 %v351, %v382
        %v388 = vsub.f32 %v373, %v381
        %v389 = vld [vmem:[%s298 + $0x20] sm:$0xff]
        %v390 = vld [vmem:[%s298 + $0x38] sm:$0xff]
        %v391 = vld [vmem:[%s298 + $0x18] sm:$0xff]
        %v392 = vld [vmem:[%s298 + $0x30] sm:$0xff]
        %397 = vrot.lane.b32.xlu0 %v391, 2
        %v398 = vpop.permute.xlu0 %397
        %399 = vrot.lane.b32.xlu0 %v389, 2
        %v400 = vpop.permute.xlu0 %399
        %401 = vrot.lane.b32.xlu0 %v392, 2
        %v402 = vpop.permute.xlu0 %401
        %403 = vrot.lane.b32.xlu0 %v390, 2
        %v404 = vpop.permute.xlu0 %403
        %v405 = vsel %vm325, %v398, %v400
        %v406 = vsel %vm325, %v402, %v404
        %v409 = vsub.f32 %v389, %v405
        %v410 = vsub.f32 %v390, %v406
        %v411 = vld [vmem:[%s298 + $0x20] sm:$0xfe]
        %v412 = vld [vmem:[%s298 + $0x50] sm:$0x1]
        %v413 = vld [vmem:[%s298 + $0x8] sm:$0x80]
        %v414 = vld [vmem:[%s298 + $0x38] sm:$0x7f]
        %v417 = vrot.slane %v413, 6
        %v418 = vrot.slane %v389, 6
        %v419 = vsel %vm338, %v417, %v418
        %v420 = vrot.slane %v414, 6
        %v421 = vsel %vm338, %v418, %v420
        %v425 = vsub.f32 %v411, %v419
        %v426 = vsub.f32 %v390, %v421
        %v427 = vsub.f32 %v412, %v420
        %vm431 = vcmask 1046528
        %v432 = vrot.slane %v386, 1
        %v433 = vrot.slane %v387, 1
        %v434 = vsel %vm431, %v432, %v433
        %v435 = vrot.slane %v388, 1
        %v436 = vsel %vm431, %v433, %v435
        %437 = vrot.lane.b32.xlu0 %v434, 1
        %v438 = vpop.permute.xlu0 %437
        %439 = vrot.lane.b32.xlu0 %v436, 1
        %v440 = vpop.permute.xlu0 %439
        %v443 = vmul.f32 %v409, %v438
        %v444 = vmul.f32 %v410, %v440
        %v448 = vrot.slane %v425, 1
        %v449 = vrot.slane %v426, 1
        %v450 = vsel %vm431, %v448, %v449
        %v451 = vrot.slane %v427, 1
        %v452 = vsel %vm431, %v449, %v451
        %453 = vrot.lane.b32.xlu0 %v450, 1
        %v454 = vpop.permute.xlu0 %453
        %455 = vrot.lane.b32.xlu0 %v452, 1
        %v456 = vpop.permute.xlu0 %455
        %v459 = vmul.f32 %v370, %v454
        %v460 = vmul.f32 %v371, %v456
        %v461 = vsub.f32 %v443, %v459
        %v462 = vsub.f32 %v444, %v460
        %465 = vrot.lane.b32.xlu0 %v461, 127
        %v466 = vpop.permute.xlu0 %465
        %467 = vrot.lane.b32.xlu0 %v462, 127
        %v468 = vpop.permute.xlu0 %467
        %471 = vst.msk [vmem:[%s248] sm:$0xff] %vm267, %v466
        %472 = vst.msk [vmem:[%s248 + $0x8] sm:$0xff] %vm267, %v468
        %v473 = vmul.f32 %v330, %v454
        %v474 = vmul.f32 %v331, %v456
        %v478 = vrot.slane %v347, 1
        %v479 = vrot.slane %v348, 1
        %v480 = vsel %vm431, %v478, %v479
        %v481 = vrot.slane %v349, 1
        %v482 = vsel %vm431, %v479, %v481
        %483 = vrot.lane.b32.xlu0 %v480, 1
        %v484 = vpop.permute.xlu0 %483
        %485 = vrot.lane.b32.xlu0 %v482, 1
        %v486 = vpop.permute.xlu0 %485
        %v489 = vmul.f32 %v409, %v484
        %v490 = vmul.f32 %v410, %v486
        %v491 = vsub.f32 %v473, %v489
        %v492 = vsub.f32 %v474, %v490
        %495 = vrot.lane.b32.xlu0 %v491, 127
        %v496 = vpop.permute.xlu0 %495
        %497 = vrot.lane.b32.xlu0 %v492, 127
        %v498 = vpop.permute.xlu0 %497
        %s501 = scalar_lea.vmem %s248, 16 [#allocation6]
        %502 = vst.msk [vmem:[%s501] sm:$0xff] %vm267, %v496
        %503 = vst.msk [vmem:[%s501 + $0x8] sm:$0xff] %vm267, %v498
        %v504 = vmul.f32 %v370, %v484
        %v505 = vmul.f32 %v371, %v486
        %v506 = vmul.f32 %v330, %v438
        %v507 = vmul.f32 %v331, %v440
        %v508 = vsub.f32 %v504, %v506
        %v509 = vsub.f32 %v505, %v507
        %512 = vrot.lane.b32.xlu0 %v508, 127
        %v513 = vpop.permute.xlu0 %512
        %514 = vrot.lane.b32.xlu0 %v509, 127
        %v515 = vpop.permute.xlu0 %514
        %s518 = scalar_lea.vmem %s248, 32 [#allocation6]
        %519 = vst.msk [vmem:[%s518] sm:$0xff] %vm267, %v513
        %520 = vst.msk [vmem:[%s518 + $0x8] sm:$0xff] %vm267, %v515
        %s521 = sand.u32 %s126, 1
        %s522 = scalar_lea.sflag [#allocation5], %s521
        %s523 = sand.u32 %s126, 1
        %s524 = smul.addr %s523, 48
        %s525 = scalar_lea.vmem [#allocation6], %s524
        // Predicated region
        $region37: #{tpu_custom_call.1} parent=31 // pred_check
          %p526 = pneg %p136
        $region38: #{tpu_custom_call.1} parent=31 // pred_check_branch
          %528 = sbr.rel (%p526) target = $region40
        $region39: #{tpu_custom_call.1} parent=31 // pred_region
          %s529 = smul.u32 2, %s25
          %s531 = ssub.s32 768, 768
          %532 = vsyncadd %s522, %s531
          %s533 = smul.addr %s24, 6
          %s534 = sadd.s32 %s529, %s533
          %s535 = smul.addr %s534, 128
          %s536 = scalar_lea.hbm %s3, %s535
          %s537 = sshll.u32 %s525, 4
          %s538 = int_to_ptr.vmem [resolvable:$true] %s537
          %543 = dma.vmem_to_hbm [thread:$0]  %s538, 768, %s536, %s522, 128, 128, 8
        $region40: #{tpu_custom_call.1} parent=31 // pred_fallthru
          _
      $region32: #{tpu_custom_call.1} parent=5 // pred_fallthru
        _
      %p544 = scmp.le.s32.totalorder 2, %s15
      // Predicated region
      $region41: #{tpu_custom_call.1} parent=5 // pred_check
        %p545 = pneg %p544
      $region42: #{tpu_custom_call.1} parent=5 // pred_check_branch
        %547 = sbr.rel (%p545) target = $region44
      $region43: #{tpu_custom_call.1} parent=5 // pred_region
        %s548 = ssub.s32 %s15, 2
        // Predicated region
        $region45: #{tpu_custom_call.1} parent=43 // pred_check
          %p549 = pneg %p142
        $region46: #{tpu_custom_call.1} parent=43 // pred_check_branch
          %551 = sbr.rel (%p549) target = $region48
        $region47: #{tpu_custom_call.1} parent=43 // pred_region
          %s552 = sand.u32 %s127, 1
          %s553 = scalar_lea.sflag [#allocation5], %s552
          %s554 = sand.u32 %s127, 1
          %s555 = smul.addr %s554, 48
          %s556 = scalar_lea.vmem [#allocation6], %s555
          %557 = dma.done %s553, 768
        $region48: #{tpu_custom_call.1} parent=43 // pred_fallthru
          _
      $region44: #{tpu_custom_call.1} parent=5 // pred_fallthru
        _
    $region6: #{tpu_custom_call.1} parent=1 // loop_footer
      %s19 = sadd.s32 1, %s15
    $region7: #{tpu_custom_call.1} parent=1 // loop_footer_branch
      %14 = sbr.rel target = $region3
    $region8: #{tpu_custom_call.1} parent=1 // loop_exit
      _
    %558 = vsyncpa [#allocation4], 1
    %s559 = scalar_lea.sflag [#allocation4], 1
    %560 = vsyncpa %s559, 1
    %561 = vsyncpa [#allocation5], 1
    %s562 = scalar_lea.sflag [#allocation5], 1
    %563 = vsyncpa %s562, 1

</llo_original>
